<compile_context>
chip_gen: v7x
topology: tpu7x:2x2x1
jax: 0.10.0
libtpu: 0.0.40
codegen_flags: <defaults>
</compile_context>

<pallas_src>
import jax
import jax.numpy as jnp
from jax.experimental import pallas as pl
from jax.experimental.pallas import tpu as pltpu


def _nw_kernel(w_ref, q_ref, k_ref, v_ref, o_ref):
    # w_ref: (1,) f32 in SMEM; q_ref: (TN,1); k_ref/v_ref: (TN,M) native dtype;
    # o_ref: (1,1,TN) f32 (lane-dense output block).
    w = w_ref[0]
    coeff = -0.5 * w * w                          # folded scalar: -(w^2)/2

    q = q_ref[...].astype(jnp.float32)            # (TN, 1), broadcasts over M
    k = k_ref[...].astype(jnp.float32)            # (TN, M)
    d = q - k
    scores = d * d * coeff                        # (TN, M), f32

    # Numerically-stable softmax-weighted sum without materializing attn.
    # (M block == full M, so Mosaic masks physical lane padding in these
    # reductions -- no explicit column mask needed.)
    m_max = jnp.max(scores, axis=1, keepdims=True)        # (TN, 1)
    e = jnp.exp(scores - m_max)                            # (TN, M)
    denom = jnp.sum(e, axis=1, keepdims=True)              # (TN, 1)
    v = v_ref[...].astype(jnp.float32)                     # cast only where used
    numer = jnp.sum(e * v, axis=1, keepdims=True)          # (TN, 1)

    res = numer * pl.reciprocal(denom, approx=False)       # (TN, 1)
    # Lane-dense store: (TN,1) -> (1,TN) via XLU transpose, into o_ref[0].
    o_ref[0] = jnp.transpose(res).astype(o_ref.dtype)


def _round_up(x, mult):
    return ((x + mult - 1) // mult) * mult


def nw_kernel_regression(w, queries, keys, values):
    """w: (1,) f32, queries: (N,), keys/values: (N, M) -> (N,) f32."""
    n, m = keys.shape
    itemsize = jnp.dtype(keys.dtype).itemsize
    sublane = {1: 32, 2: 16, 4: 8}.get(itemsize, 8)   # rows per vreg for dtype
    m_lanes = _round_up(max(m, 1), 128)               # physical lane footprint

    # Per-generation VMEM capacity; keep headroom (v7x: only 64 MiB per TC).
    try:
        vmem_cap = int(pltpu.get_tpu_info().vmem_capacity_bytes)
    except Exception:  # pragma: no cover - conservative fallback
        vmem_cap = 64 << 20
    budget = min(vmem_cap * 3 // 4, 48 << 20)

    # Per-row VMEM cost of one tile: double-buffered k+v DMA buffers in native
    # dtype, plus ~4 live f32 full-tile temporaries (k / d / scores / e).
    bytes_per_row = 2 * 2 * m_lanes * itemsize + 4 * m_lanes * 4

    tile_n = max(sublane,
                 min(1024, (budget // max(bytes_per_row, 1)) // sublane * sublane))
    if n > sublane:
        # >= 2 grid steps so the "parallel" axis shards across v7x's 2 TCs.
        tile_n = min(tile_n, _round_up(-(-n // 2), sublane))
    tile_n = min(tile_n, _round_up(n, sublane))
    n_pad = _round_up(n, tile_n)
    num_tiles = n_pad // tile_n

    # Pad only the row axis; M stays untouched (no extra HBM round-trip).
    q2 = jnp.pad(queries.reshape(n, 1), ((0, n_pad - n), (0, 0)))
    k2 = jnp.pad(keys, ((0, n_pad - n), (0, 0)))
    v2 = jnp.pad(values, ((0, n_pad - n), (0, 0)))
    w2 = w.reshape(1).astype(jnp.float32)

    vmem_limit = int(min(48 << 20,
                         max(4 << 20, bytes_per_row * tile_n + (2 << 20))))

    out = pl.pallas_call(
        _nw_kernel,
        out_shape=jax.ShapeDtypeStruct((num_tiles, 1, tile_n), jnp.float32),
        grid=(num_tiles,),
        in_specs=[
            pl.BlockSpec(memory_space=pltpu.MemorySpace.SMEM),      # w
            pl.BlockSpec((tile_n, 1), lambda i: (i, 0)),            # queries
            pl.BlockSpec((tile_n, m), lambda i: (i, 0)),            # keys (full M)
            pl.BlockSpec((tile_n, m), lambda i: (i, 0)),            # values (full M)
        ],
        out_specs=pl.BlockSpec((1, 1, tile_n), lambda i: (i, 0, 0)),
        compiler_params=pltpu.CompilerParams(
            dimension_semantics=("parallel",),
            vmem_limit_bytes=vmem_limit,
        ),
    )(w2, q2, k2, v2)
    return out.reshape(n_pad)[:n]


def _reference(w, queries, keys, values):
    q = queries[:, None]
    scores = -(((q - keys) * w[0]) ** 2) / 2.0
    attn = jax.nn.softmax(scores, axis=1)
    return jnp.sum(attn * values, axis=1)


def f(x):
    return 2.0 * jnp.sin(x) + x ** 0.8


if __name__ == "__main__":
    key = jax.random.PRNGKey(0)
    k_noise, k_w, k_x = jax.random.split(key, 3)

    # Synthetic data, mirroring the D2L setup (small shapes).
    n_train = 50
    x_train = jnp.sort(jax.random.uniform(k_x, (n_train,)) * 5.0)
    y_train = f(x_train) + 0.5 * jax.random.normal(k_noise, (n_train,))

    x_test = jnp.arange(0.0, 5.0, 0.1, dtype=jnp.float32)     # (50,)
    n_test = x_test.shape[0]

    keys = jnp.tile(x_train[None, :], (n_test, 1))             # (50, 50)
    values = jnp.tile(y_train[None, :], (n_test, 1))           # (50, 50)

    # Deterministic parameter init (nn.Parameter(torch.rand((1,)))).
    w = jax.random.uniform(k_w, (1,), dtype=jnp.float32)

    out = nw_kernel_regression(w, x_test, keys, values)
    out = jax.block_until_ready(out)

    ref = _reference(w, x_test, keys, values)
    assert out.shape == (n_test,)
    assert jnp.allclose(out, ref, atol=1e-5, rtol=1e-5)

    print("KERNEL_OK")
</pallas_src>

<mosaic_0001>
module attributes {stable_mosaic.version = 11 : i64} {
  func.func @_nw_kernel(%arg0: i32, %arg1: memref<1xf32, #tpu.memory_space<smem>>, %arg2: memref<32x1xf32, #tpu.memory_space<vmem>>, %arg3: memref<32x50xf32, #tpu.memory_space<vmem>>, %arg4: memref<32x50xf32, #tpu.memory_space<vmem>>, %arg5: memref<1x1x32xf32, #tpu.memory_space<vmem>>) attributes {dimension_semantics = [#tpu.dimension_semantics<parallel>], iteration_bounds = array<i64: 2>, scalar_prefetch = 0 : i64, scratch_operands = 0 : i64, tpu.core_type = #tpu.core_type<tc>, window_params = [{transform_indices = @transform_0, window_bounds = array<i64: 1>}, {transform_indices = @transform_1, window_bounds = array<i64: 32, 1>}, {transform_indices = @transform_2, window_bounds = array<i64: 32, 50>}, {transform_indices = @transform_3, window_bounds = array<i64: 32, 50>}, {transform_indices = @transform_4, window_bounds = array<i64: 1, 1, 32>}]} {
    %c0 = arith.constant 0 : index
    %0 = memref.load %arg1[%c0] : memref<1xf32, #tpu.memory_space<smem>>
    %cst = arith.constant -5.000000e-01 : f32
    %1 = arith.mulf %cst, %0 : f32
    %2 = arith.mulf %1, %0 : f32
    %c0_0 = arith.constant 0 : index
    %c0_1 = arith.constant 0 : index
    %3 = vector.load %arg2[%c0_0, %c0_1] : memref<32x1xf32, #tpu.memory_space<vmem>>, vector<32x1xf32>
    %c0_2 = arith.constant 0 : index
    %c0_3 = arith.constant 0 : index
    %4 = vector.load %arg3[%c0_2, %c0_3] : memref<32x50xf32, #tpu.memory_space<vmem>>, vector<32x50xf32>
    %5 = vector.broadcast %3 : vector<32x1xf32> to vector<32x50xf32>
    %6 = arith.subf %5, %4 : vector<32x50xf32>
    %7 = arith.mulf %6, %6 : vector<32x50xf32>
    %8 = vector.broadcast %2 : f32 to vector<32x50xf32>
    %9 = arith.mulf %7, %8 : vector<32x50xf32>
    %cst_4 = arith.constant dense<0xFF800000> : vector<32xf32>
    %10 = vector.multi_reduction <maximumf>, %9, %cst_4 [1] : vector<32x50xf32> to vector<32xf32>
    %11 = vector.shape_cast %10 : vector<32xf32> to vector<32x1xf32>
    %12 = vector.broadcast %11 : vector<32x1xf32> to vector<32x50xf32>
    %13 = arith.subf %9, %12 : vector<32x50xf32>
    %14 = math.exp %13 : vector<32x50xf32>
    %cst_5 = arith.constant dense<0.000000e+00> : vector<32xf32>
    %15 = vector.multi_reduction <add>, %14, %cst_5 [1] : vector<32x50xf32> to vector<32xf32>
    %16 = vector.shape_cast %15 : vector<32xf32> to vector<32x1xf32>
    %c0_6 = arith.constant 0 : index
    %c0_7 = arith.constant 0 : index
    %17 = vector.load %arg4[%c0_6, %c0_7] : memref<32x50xf32, #tpu.memory_space<vmem>>, vector<32x50xf32>
    %18 = arith.mulf %14, %17 : vector<32x50xf32>
    %cst_8 = arith.constant dense<0.000000e+00> : vector<32xf32>
    %19 = vector.multi_reduction <add>, %18, %cst_8 [1] : vector<32x50xf32> to vector<32xf32>
    %20 = vector.shape_cast %19 : vector<32xf32> to vector<32x1xf32>
    %21 = tpu.reciprocal %16 : vector<32x1xf32> -> vector<32x1xf32>
    %22 = arith.mulf %20, %21 : vector<32x1xf32>
    %23 = tpu.transpose %22, [1, 0] : vector<32x1xf32> -> vector<1x32xf32>
    %c0_9 = arith.constant 0 : index
    %c0_10 = arith.constant 0 : index
    %c0_11 = arith.constant 0 : index
    %24 = vector.load %arg5[%c0_9, %c0_10, %c0_11] : memref<1x1x32xf32, #tpu.memory_space<vmem>>, vector<1x1x32xf32>
    %25 = vector.shape_cast %24 : vector<1x1x32xf32> to vector<1x32xf32>
    %26 = vector.shape_cast %23 : vector<1x32xf32> to vector<1x1x32xf32>
    tpu.vector_store %arg5[%c0_9, %c0_10, %c0_11], %26 {strides = array<i32>} : memref<1x1x32xf32, #tpu.memory_space<vmem>>, vector<1x1x32xf32>,
    return
  }
  func.func @transform_0(%arg0: i32) -> i32 {
    %c0_i32 = arith.constant 0 : i32
    %c0_i32_0 = arith.constant 0 : i32
    return %c0_i32 : i32
  }
  func.func @transform_1(%arg0: i32) -> (i32, i32) {
    %c0_i32 = arith.constant 0 : i32
    %c0_i32_0 = arith.constant 0 : i32
    return %arg0, %c0_i32 : i32, i32
  }
  func.func @transform_2(%arg0: i32) -> (i32, i32) {
    %c0_i32 = arith.constant 0 : i32
    %c0_i32_0 = arith.constant 0 : i32
    return %arg0, %c0_i32 : i32, i32
  }
  func.func @transform_3(%arg0: i32) -> (i32, i32) {
    %c0_i32 = arith.constant 0 : i32
    %c0_i32_0 = arith.constant 0 : i32
    return %arg0, %c0_i32 : i32, i32
  }
  func.func @transform_4(%arg0: i32) -> (i32, i32, i32) {
    %c0_i32 = arith.constant 0 : i32
    %c0_i32_0 = arith.constant 0 : i32
    %c0_i32_1 = arith.constant 0 : i32
    return %arg0, %c0_i32, %c0_i32_0 : i32, i32, i32
  }
}

</mosaic_0001>

<llo_original>
// kernel: tpu_custom_call.1
$region0: #{tpu_custom_call.1}
  #allocation0 [shape = 'u32[]', space=smem, size = 0x4, offset = 0x4, fixed_abs, tag = 'smem constant byte address 0x4 - core index']
  #allocation1 [shape = 'u32[144,128]{1,0:T(1,128)}', space=vmem, size = 0x12000, scoped, tag = 'internal scratch']
  #allocation2 [shape = 'f32[1]{0:T(128)S(6)}', space=smem, size = 0x200, scoped, tag = 'scoped memory for tpu_custom_call.1']
  %s0 = inlined_call_operand.<no memory space> [shape: f32[1], index: 0, kind: input, shape index: {}]
  %s1 = inlined_call_operand.vmem [shape: f32[64,1], index: 1, kind: input, shape index: {}]
  %s2 = inlined_call_operand.vmem [shape: f32[64,50], index: 2, kind: input, shape index: {}]
  %s3 = inlined_call_operand.vmem [shape: f32[64,50], index: 3, kind: input, shape index: {}]
  %s4 = inlined_call_operand.hbm [shape: f32[2,1,32], index: 4, kind: output, shape index: {}]
  %s5 = sld [smem:[#allocation0]]
  $region49: #{tpu_custom_call.1} parent=0
    _
  %s7 = ssub.s32 1, %s5
  %s8 = scalar_select 0, %s7, %s5
  %9 = sst [smem:[#allocation2]] %s0
  $region1: #{tpu_custom_call.1} parent=0
    #allocation3 [shape = 'u8[1024]{0}', space=vmem, size = 0x400, scoped, tag = 'output window, operand 0']
    #allocation4 [shape = 's32[2]{0}', space=sflag, size = 0x8, scoped, tag = 'scoped memory for tpu_custom_call.1']
    %10 = vsyncpa [#allocation4], 0
    %s11 = scalar_lea.sflag [#allocation4], 1
    %12 = vsyncpa %s11, 0
    loop: start=0, step=1, limit=4
    $region2: #{tpu_custom_call.1} parent=1 // loop_pre_header
      _
    $region3: #{tpu_custom_call.1} parent=1 // loop_header
      %s14 = sphi 0, %s18
      %p15 = scmp.ge.s32.totalorder %s14, 4
      %s22 = sphi 0, %s22
      %s24 = sphi 0, %s22
      %s25 = sphi 0, %s24
      %s39 = sphi 0, %s25
      %s45 = sphi 0, %s47
      %s48 = sphi 0, %s45
      %s49 = sphi 0, %s48
      %s65 = sphi 0, %s49
      %s71 = sphi 0, %s73
      %s74 = sphi 0, %s71
      %s75 = sphi 0, %s74
      %s91 = sphi 0, %s75
      %s97 = sphi 0, %s99
      %s100 = sphi 0, %s97
      %s101 = sphi 0, %s100
      %s117 = sphi 0, %s101
      %s123 = sphi 0, %s125
      %s126 = sphi 0, %s123
      %s127 = sphi 0, %s126
      %s143 = sphi 0, %s127
    $region4: #{tpu_custom_call.1} parent=1 // loop_header_branch
      %17 = sbr.rel (%p15) target = $region8
    $region5: #{tpu_custom_call.1} parent=1 // loop_body
      %s19 = ssub.s32 %s14, 1
      %s20 = ssub.s32 %s14, 2
      %s21 = sadd.s32 %s14, 1
      %s23 = sadd.s32 %s22, 1
      %p26 = scmp.eq.s32.totalorder %s14, 1
      %p27 = scmp.ne.s32.totalorder %s22, %s24
      %p28 = scmp.eq.s32.totalorder %s14, 0
      %p29 = por %p27, %p28
      %p30 = scmp.ne.s32.totalorder %s22, %s24
      %p31 = scmp.eq.s32.totalorder %s19, 1
      %p32 = por %p30, %p31
      %p33 = scmp.ne.s32.totalorder %s24, %s25
      %p34 = scmp.eq.s32.totalorder %s19, 0
      %p35 = por %p33, %p34
      %p36 = scmp.ne.s32.totalorder %s24, %s25
      %p37 = scmp.eq.s32.totalorder %s20, 1
      %p38 = por %p36, %p37
      %p40 = scmp.ne.s32.totalorder %s25, %s39
      %p41 = scmp.eq.s32.totalorder %s20, 0
      %p42 = por %p40, %p41
      %s43 = ssub.s32 %s14, %s21
      %p44 = scmp.eq.s32.totalorder %s43, 0
      %s46 = sadd.s32 %s45, 1
      %s47 = scalar_select %p44, %s45, %s46
      %p50 = pneg %p44
      %p51 = scmp.eq.s32.totalorder %s14, 1
      %p52 = por %p50, %p51
      %p53 = scmp.ne.s32.totalorder %s45, %s48
      %p54 = scmp.eq.s32.totalorder %s14, 0
      %p55 = por %p53, %p54
      %p56 = scmp.ne.s32.totalorder %s45, %s48
      %p57 = scmp.eq.s32.totalorder %s19, 1
      %p58 = por %p56, %p57
      %p59 = scmp.ne.s32.totalorder %s48, %s49
      %p60 = scmp.eq.s32.totalorder %s19, 0
      %p61 = por %p59, %p60
      %p62 = scmp.ne.s32.totalorder %s48, %s49
      %p63 = scmp.eq.s32.totalorder %s20, 1
      %p64 = por %p62, %p63
      %p66 = scmp.ne.s32.totalorder %s49, %s65
      %p67 = scmp.eq.s32.totalorder %s20, 0
      %p68 = por %p66, %p67
      %s69 = ssub.s32 %s14, %s21
      %p70 = scmp.eq.s32.totalorder %s69, 0
      %s72 = sadd.s32 %s71, 1
      %s73 = scalar_select %p70, %s71, %s72
      %p76 = pneg %p70
      %p77 = scmp.eq.s32.totalorder %s14, 1
      %p78 = por %p76, %p77
      %p79 = scmp.ne.s32.totalorder %s71, %s74
      %p80 = scmp.eq.s32.totalorder %s14, 0
      %p81 = por %p79, %p80
      %p82 = scmp.ne.s32.totalorder %s71, %s74
      %p83 = scmp.eq.s32.totalorder %s19, 1
      %p84 = por %p82, %p83
      %p85 = scmp.ne.s32.totalorder %s74, %s75
      %p86 = scmp.eq.s32.totalorder %s19, 0
      %p87 = por %p85, %p86
      %p88 = scmp.ne.s32.totalorder %s74, %s75
      %p89 = scmp.eq.s32.totalorder %s20, 1
      %p90 = por %p88, %p89
      %p92 = scmp.ne.s32.totalorder %s75, %s91
      %p93 = scmp.eq.s32.totalorder %s20, 0
      %p94 = por %p92, %p93
      %s95 = ssub.s32 %s14, %s21
      %p96 = scmp.eq.s32.totalorder %s95, 0
      %s98 = sadd.s32 %s97, 1
      %s99 = scalar_select %p96, %s97, %s98
      %p102 = pneg %p96
      %p103 = scmp.eq.s32.totalorder %s14, 1
      %p104 = por %p102, %p103
      %p105 = scmp.ne.s32.totalorder %s97, %s100
      %p106 = scmp.eq.s32.totalorder %s14, 0
      %p107 = por %p105, %p106
      %p108 = scmp.ne.s32.totalorder %s97, %s100
      %p109 = scmp.eq.s32.totalorder %s19, 1
      %p110 = por %p108, %p109
      %p111 = scmp.ne.s32.totalorder %s100, %s101
      %p112 = scmp.eq.s32.totalorder %s19, 0
      %p113 = por %p111, %p112
      %p114 = scmp.ne.s32.totalorder %s100, %s101
      %p115 = scmp.eq.s32.totalorder %s20, 1
      %p116 = por %p114, %p115
      %p118 = scmp.ne.s32.totalorder %s101, %s117
      %p119 = scmp.eq.s32.totalorder %s20, 0
      %p120 = por %p118, %p119
      %s121 = ssub.s32 %s14, %s21
      %p122 = scmp.eq.s32.totalorder %s121, 0
      %s124 = sadd.s32 %s123, 1
      %s125 = scalar_select %p122, %s123, %s124
      %p128 = pneg %p122
      %p129 = scmp.eq.s32.totalorder %s14, 1
      %p130 = por %p128, %p129
      %p131 = scmp.ne.s32.totalorder %s123, %s126
      %p132 = scmp.eq.s32.totalorder %s14, 0
      %p133 = por %p131, %p132
      %p134 = scmp.ne.s32.totalorder %s123, %s126
      %p135 = scmp.eq.s32.totalorder %s19, 1
      %p136 = por %p134, %p135
      %p137 = scmp.ne.s32.totalorder %s126, %s127
      %p138 = scmp.eq.s32.totalorder %s19, 0
      %p139 = por %p137, %p138
      %p140 = scmp.ne.s32.totalorder %s126, %s127
      %p141 = scmp.eq.s32.totalorder %s20, 1
      %p142 = por %p140, %p141
      %p144 = scmp.ne.s32.totalorder %s127, %s143
      %p145 = scmp.eq.s32.totalorder %s20, 0
      %p146 = por %p144, %p145
      %p147 = scmp.le.s32.totalorder 1, %s14
      %p148 = scmp.lt.s32.totalorder %s14, 3
      %p149 = pnand %p147, %p148
      %p150 = pneg %p149
      // Predicated region
      $region9: #{tpu_custom_call.1} parent=5 // pred_check
        _
      $region10: #{tpu_custom_call.1} parent=5 // pred_check_branch
        %152 = sbr.rel (%p149) target = $region12
      $region11: #{tpu_custom_call.1} parent=5 // pred_region
        %s153 = ssub.s32 %s14, 1
        // Predicated region
        $region13: #{tpu_custom_call.1} parent=11 // pred_check
          %p154 = pneg %p35
        $region14: #{tpu_custom_call.1} parent=11 // pred_check_branch
          %156 = sbr.rel (%p154) target = $region16
        $region15: #{tpu_custom_call.1} parent=11 // pred_region
          _
        $region16: #{tpu_custom_call.1} parent=11 // pred_fallthru
          _
      $region12: #{tpu_custom_call.1} parent=5 // pred_fallthru
        _
      %p157 = scmp.lt.s32.totalorder %s14, 2
      // Predicated region
      $region17: #{tpu_custom_call.1} parent=5 // pred_check
        %p158 = pneg %p157
      $region18: #{tpu_custom_call.1} parent=5 // pred_check_branch
        %160 = sbr.rel (%p158) target = $region20
      $region19: #{tpu_custom_call.1} parent=5 // pred_region
        // Predicated region
        $region21: #{tpu_custom_call.1} parent=19 // pred_check
          %p161 = pneg %p55
        $region22: #{tpu_custom_call.1} parent=19 // pred_check_branch
          %163 = sbr.rel (%p161) target = $region24
        $region23: #{tpu_custom_call.1} parent=19 // pred_region
          %s164 = smul.u32 4, %s14
          %p165 = scmp.lt.s32.totalorder %s164, 7
          %s166 = scalar_select %p165, %s164, 7
          %s167 = smul.addr %s166, 8
          %s168 = scalar_lea.vmem %s1, %s167
          %s169 = smul.u32 4, %s14
        $region24: #{tpu_custom_call.1} parent=19 // pred_fallthru
          _
        // Predicated region
        $region25: #{tpu_custom_call.1} parent=19 // pred_check
          %p170 = pneg %p81
        $region26: #{tpu_custom_call.1} parent=19 // pred_check_branch
          %172 = sbr.rel (%p170) target = $region28
        $region27: #{tpu_custom_call.1} parent=19 // pred_region
          %s173 = smul.u32 4, %s14
          %p174 = scmp.lt.s32.totalorder %s173, 7
          %s175 = scalar_select %p174, %s173, 7
          %s176 = smul.addr %s175, 8
          %s177 = scalar_lea.vmem %s2, %s176
          %s178 = smul.u32 4, %s14
        $region28: #{tpu_custom_call.1} parent=19 // pred_fallthru
          _
        // Predicated region
        $region29: #{tpu_custom_call.1} parent=19 // pred_check
          %p179 = pneg %p107
        $region30: #{tpu_custom_call.1} parent=19 // pred_check_branch
          %181 = sbr.rel (%p179) target = $region32
        $region31: #{tpu_custom_call.1} parent=19 // pred_region
          %s182 = smul.u32 4, %s14
          %p183 = scmp.lt.s32.totalorder %s182, 7
          %s184 = scalar_select %p183, %s182, 7
          %s185 = smul.addr %s184, 8
          %s186 = scalar_lea.vmem %s3, %s185
          %s187 = smul.u32 4, %s14
        $region32: #{tpu_custom_call.1} parent=19 // pred_fallthru
          _
      $region20: #{tpu_custom_call.1} parent=5 // pred_fallthru
        _
      %p188 = scmp.le.s32.totalorder 1, %s14
      %p189 = scmp.lt.s32.totalorder %s14, 3
      %p190 = pnand %p188, %p189
      %p191 = pneg %p190
      // Predicated region
      $region33: #{tpu_custom_call.1} parent=5 // pred_check
        _
      $region34: #{tpu_custom_call.1} parent=5 // pred_check_branch
        %193 = sbr.rel (%p190) target = $region36
      $region35: #{tpu_custom_call.1} parent=5 // pred_region
        %s194 = ssub.s32 %s14, 1
        %p195 = pneg %p35
        %p196 = pneg %p32
        %s197 = smul.u32 4, %s19
        %p198 = scmp.lt.s32.totalorder %s197, 7
        %s199 = scalar_select %p198, %s197, 7
        %s200 = smul.addr %s199, 8
        %s201 = scalar_lea.vmem %s1, %s200
        %p202 = pneg %p61
        %p203 = pneg %p58
        %s204 = smul.u32 4, %s19
        %p205 = scmp.lt.s32.totalorder %s204, 7
        %s206 = scalar_select %p205, %s204, 7
        %s207 = smul.addr %s206, 8
        %s208 = scalar_lea.vmem %s2, %s207
        %p209 = pneg %p87
        %p210 = pneg %p84
        %s211 = smul.u32 4, %s19
        %p212 = scmp.lt.s32.totalorder %s211, 7
        %s213 = scalar_select %p212, %s211, 7
        %s214 = smul.addr %s213, 8
        %s215 = scalar_lea.vmem %s3, %s214
        %p216 = pneg %p113
        %p217 = pneg %p110
        %p218 = pneg %p139
        %p219 = pneg %p136
        %s220 = sand.u32 %s126, 1
        %s221 = scalar_lea.sflag [#allocation4], %s220
        %s222 = sand.u32 %s126, 1
        %s223 = scalar_lea.vmem [#allocation3], %s222
        %s224 = smul.u32 4, %s19
        %p225 = scmp.lt.s32.totalorder %s224, 7
        %s226 = scalar_select %p225, %s224, 7
        %s227 = smul.addr %s226, 8
        %s228 = scalar_lea.vmem %s1, %s227
        %s229 = smul.u32 4, %s19
        %s230 = smul.u32 4, %s19
        %p231 = scmp.lt.s32.totalorder %s230, 7
        %s232 = scalar_select %p231, %s230, 7
        %s233 = smul.addr %s232, 8
        %s234 = scalar_lea.vmem %s2, %s233
        %s235 = smul.u32 4, %s19
        %s236 = smul.u32 4, %s19
        %p237 = scmp.lt.s32.totalorder %s236, 7
        %s238 = scalar_select %p237, %s236, 7
        %s239 = smul.addr %s238, 8
        %s240 = scalar_lea.vmem %s3, %s239
        %s241 = smul.u32 4, %s19
        %s242 = sld [smem:[#allocation2]]
        %s243 = smul.f32 %s242, -0.5
        %s244 = smul.f32 %s243, %s242
        %v245 = vld [vmem:[%s228] sm:$0xff]
        %v246 = vld [vmem:[%s228 + $0x8] sm:$0xff]
        %v247 = vld [vmem:[%s228 + $0x10] sm:$0xff]
        %v248 = vld [vmem:[%s228 + $0x18] sm:$0xff]
        %v249 = vld [vmem:[%s234] sm:$0xff]
        %v250 = vld [vmem:[%s234 + $0x8] sm:$0xff]
        %v251 = vld [vmem:[%s234 + $0x10] sm:$0xff]
        %v252 = vld [vmem:[%s234 + $0x18] sm:$0xff]
        %254 = vset.pattern.permute.xlu0 0
        %255 = vperm.xlu0 %254, %v245
        %v256 = vpop.permute.xlu0 %255
        %259 = vset.pattern.permute.xlu0 0
        %260 = vperm.xlu0 %259, %v246
        %v261 = vpop.permute.xlu0 %260
        %264 = vset.pattern.permute.xlu0 0
        %265 = vperm.xlu0 %264, %v247
        %v266 = vpop.permute.xlu0 %265
        %269 = vset.pattern.permute.xlu0 0
        %270 = vperm.xlu0 %269, %v248
        %v271 = vpop.permute.xlu0 %270
        %v273 = vsub.f32 %v256, %v249
        %v274 = vsub.f32 %v261, %v250
        %v275 = vsub.f32 %v266, %v251
        %v276 = vsub.f32 %v271, %v252
        %v277 = vmul.f32 %v273, %v273
        %v278 = vmul.f32 %v274, %v274
        %v279 = vmul.f32 %v275, %v275
        %v280 = vmul.f32 %v276, %v276
        %v281 = vstv %s244
        %v282 = vmul.f32 %v277, %v281
        %v283 = vmul.f32 %v278, %v281
        %v284 = vmul.f32 %v279, %v281
        %v285 = vmul.f32 %v280, %v281
        %vm286 = vcmask 408576
        %v287 = vsel %vm286, %v282, -inf
        %288 = vmax.xlane.f32.xlu0 %v287
        %v289 = vpop.xlane.xlu0 %288
        %v290 = vsel %vm286, %v283, -inf
        %291 = vmax.xlane.f32.xlu0 %v290
        %v292 = vpop.xlane.xlu0 %291
        %v293 = vsel %vm286, %v284, -inf
        %294 = vmax.xlane.f32.xlu0 %v293
        %v295 = vpop.xlane.xlu0 %294
        %v296 = vsel %vm286, %v285, -inf
        %297 = vmax.xlane.f32.xlu0 %v296
        %v298 = vpop.xlane.xlu0 %297
        %v299 = vsub.f32 %v282, %v289
        %v300 = vsub.f32 %v283, %v292
        %v301 = vsub.f32 %v284, %v295
        %v302 = vsub.f32 %v285, %v298
        %v303 = vmul.f32 %v299, 1.442695
        %v304 = vpow.pop %v303
        %v305 = vmul.f32 %v300, 1.442695
        %v306 = vpow.pop %v305
        %v307 = vmul.f32 %v301, 1.442695
        %v308 = vpow.pop %v307
        %v309 = vmul.f32 %v302, 1.442695
        %v310 = vpow.pop %v309
        %v311 = vsel %vm286, %v304, 0.0
        %312 = vadd.xlane.f32.xlu0 %v311
        %v313 = vpop.xlane.xlu0 %312
        %v314 = vsel %vm286, %v306, 0.0
        %315 = vadd.xlane.f32.xlu0 %v314
        %v316 = vpop.xlane.xlu0 %315
        %v317 = vsel %vm286, %v308, 0.0
        %318 = vadd.xlane.f32.xlu0 %v317
        %v319 = vpop.xlane.xlu0 %318
        %v320 = vsel %vm286, %v310, 0.0
        %321 = vadd.xlane.f32.xlu0 %v320
        %v322 = vpop.xlane.xlu0 %321
        %v323 = vld [vmem:[%s240] sm:$0xff]
        %v324 = vld [vmem:[%s240 + $0x8] sm:$0xff]
        %v325 = vld [vmem:[%s240 + $0x10] sm:$0xff]
        %v326 = vld [vmem:[%s240 + $0x18] sm:$0xff]
        %v327 = vmul.f32 %v304, %v323
        %v328 = vmul.f32 %v306, %v324
        %v329 = vmul.f32 %v308, %v325
        %v330 = vmul.f32 %v310, %v326
        %v331 = vsel %vm286, %v327, 0.0
        %332 = vadd.xlane.f32.xlu0 %v331
        %v333 = vpop.xlane.xlu0 %332
        %v334 = vsel %vm286, %v328, 0.0
        %335 = vadd.xlane.f32.xlu0 %v334
        %v336 = vpop.xlane.xlu0 %335
        %v337 = vsel %vm286, %v329, 0.0
        %338 = vadd.xlane.f32.xlu0 %v337
        %v339 = vpop.xlane.xlu0 %338
        %v340 = vsel %vm286, %v330, 0.0
        %341 = vadd.xlane.f32.xlu0 %v340
        %v342 = vpop.xlane.xlu0 %341
        %v343 = vrcp.pop %v313
        %v344 = vrcp.pop %v316
        %v345 = vrcp.pop %v319
        %v346 = vrcp.pop %v322
        %v347 = vmul.f32 %v333, %v343
        %v348 = vmul.f32 %v336, %v344
        %v349 = vmul.f32 %v339, %v345
        %v350 = vmul.f32 %v342, %v346
        %351 = vxpose.xlu0.b32.start [1/16] %v347, 128
        %352 = vxpose.xlu0.b32.cont [2/16] %v348, 128
        %353 = vxpose.xlu0.b32.cont [3/16] %v349, 128
        %354 = vxpose.xlu0.b32.cont [4/16] %v350, 128
        %355 = vxpose.xlu0.b32.cont [5/16] 0.0, 128
        %356 = vxpose.xlu0.b32.cont [6/16] 0.0, 128
        %357 = vxpose.xlu0.b32.cont [7/16] 0.0, 128
        %358 = vxpose.xlu0.b32.cont [8/16] 0.0, 128
        %359 = vxpose.xlu0.b32.cont [9/16] 0.0, 128
        %360 = vxpose.xlu0.b32.cont [10/16] 0.0, 128
        %361 = vxpose.xlu0.b32.cont [11/16] 0.0, 128
        %362 = vxpose.xlu0.b32.cont [12/16] 0.0, 128
        %363 = vxpose.xlu0.b32.cont [13/16] 0.0, 128
        %364 = vxpose.xlu0.b32.cont [14/16] 0.0, 128
        %365 = vxpose.xlu0.b32.cont [15/16] 0.0, 128
        %366 = vxpose.xlu0.b32.end [16/16] 0.0, 128
        %v367 = vpop.trf.xlu0
        %v368 = vpop.trf.xlu0
        %v369 = vpop.trf.xlu0
        %v370 = vpop.trf.xlu0
        %v371 = vpop.trf.xlu0
        %v372 = vpop.trf.xlu0
        %v373 = vpop.trf.xlu0
        %v374 = vpop.trf.xlu0
        %v375 = vpop.trf.xlu0
        %v376 = vpop.trf.xlu0
        %v377 = vpop.trf.xlu0
        %v378 = vpop.trf.xlu0
        %v379 = vpop.trf.xlu0
        %v380 = vpop.trf.xlu0
        %v381 = vpop.trf.xlu0
        %v382 = vpop.trf.xlu0
        %vm383 = vcmask 253952
        %384 = vst.msk [vmem:[%s223] sm:$0x1] %vm383, %v367
        %s385 = sand.u32 %s126, 1
        %s386 = scalar_lea.sflag [#allocation4], %s385
        %s387 = sand.u32 %s126, 1
        %s388 = scalar_lea.vmem [#allocation3], %s387
        // Predicated region
        $region37: #{tpu_custom_call.1} parent=35 // pred_check
          %p389 = pneg %p136
        $region38: #{tpu_custom_call.1} parent=35 // pred_check_branch
          %391 = sbr.rel (%p389) target = $region40
        $region39: #{tpu_custom_call.1} parent=35 // pred_region
          %s393 = ssub.s32 16, 16
          %394 = vsyncadd %s386, %s393
          %s395 = smul.addr %s19, 16
          %s396 = scalar_lea.hbm %s4, %s395
          %s398 = sshll.u32 %s388, 4
          %s399 = int_to_ptr.vmem [resolvable:$true] %s398
          %401 = dma.vmem_to_hbm [thread:$0]  %s399, 16, %s396, %s386
        $region40: #{tpu_custom_call.1} parent=35 // pred_fallthru
          _
      $region36: #{tpu_custom_call.1} parent=5 // pred_fallthru
        _
      %p402 = scmp.le.s32.totalorder 2, %s14
      // Predicated region
      $region41: #{tpu_custom_call.1} parent=5 // pred_check
        %p403 = pneg %p402
      $region42: #{tpu_custom_call.1} parent=5 // pred_check_branch
        %405 = sbr.rel (%p403) target = $region44
      $region43: #{tpu_custom_call.1} parent=5 // pred_region
        %s406 = ssub.s32 %s14, 2
        // Predicated region
        $region45: #{tpu_custom_call.1} parent=43 // pred_check
          %p407 = pneg %p142
        $region46: #{tpu_custom_call.1} parent=43 // pred_check_branch
          %409 = sbr.rel (%p407) target = $region48
        $region47: #{tpu_custom_call.1} parent=43 // pred_region
          %s410 = sand.u32 %s127, 1
          %s411 = scalar_lea.sflag [#allocation4], %s410
          %s412 = sand.u32 %s127, 1
          %s413 = scalar_lea.vmem [#allocation3], %s412
          %414 = dma.done %s411, 16
        $region48: #{tpu_custom_call.1} parent=43 // pred_fallthru
          _
      $region44: #{tpu_custom_call.1} parent=5 // pred_fallthru
        _
    $region6: #{tpu_custom_call.1} parent=1 // loop_footer
      %s18 = sadd.s32 1, %s14
    $region7: #{tpu_custom_call.1} parent=1 // loop_footer_branch
      %13 = sbr.rel target = $region3
    $region8: #{tpu_custom_call.1} parent=1 // loop_exit
      _
    %415 = vsyncpa [#allocation4], 1
    %s416 = scalar_lea.sflag [#allocation4], 1
    %417 = vsyncpa %s416, 1

</llo_original>
